<compile_context>
chip_gen: v7x
topology: tpu7x:2x2x1
jax: 0.10.0
libtpu: 0.0.40
codegen_flags: <defaults>
</compile_context>

<pallas_src>
import functools

import jax
import jax.numpy as jnp
from jax.experimental import pallas as pl
from jax.experimental.pallas import tpu as pltpu


def _noise_inject_kernel(img_ref, noise_ref, w_ref, out_ref):
    # img_ref:   (1, C, T)
    # noise_ref: (1, 1, T)
    # w_ref:     (1, C, 1)
    # out_ref:   (1, C, T)
    img = img_ref[...].astype(jnp.float32)
    noise = noise_ref[...].astype(jnp.float32)
    w = w_ref[...].astype(jnp.float32)
    # (1,C,1) * (1,1,T) -> (1,C,T); compute in f32, cast once at the store.
    out_ref[...] = (img + w * noise).astype(out_ref.dtype)


def _choose_tile(hw_pad, c, itemsize, target_bytes=2 << 20):
    """Largest T (multiple of 128, dividing hw_pad) with C*T*itemsize <= target."""
    best = 128
    for t in range(128, hw_pad + 1, 128):
        if hw_pad % t == 0 and c * t * itemsize <= target_bytes:
            best = t
    return best


@functools.partial(jax.jit, static_argnames=("donate_image",))
def noise_injection_2d(image, noise, weight, *, donate_image=False):
    """image: (N, C, H, W); noise: (N, 1, H, W); weight: (1, C, 1, 1)."""
    N, C, H, W = image.shape
    assert noise.shape == (N, 1, H, W)
    assert weight.shape == (1, C, 1, 1)

    out_dtype = jnp.result_type(image.dtype, weight.dtype, noise.dtype)

    # Fuse spatial dims into a lane-dense last axis, padded to a multiple of 128.
    hw = H * W
    hw_pad = ((hw + 127) // 128) * 128
    img2 = image.reshape(N, C, hw)
    nse2 = noise.reshape(N, 1, hw)
    if hw_pad != hw:
        pad = hw_pad - hw
        img2 = jnp.pad(img2, ((0, 0), (0, 0), (0, pad)))
        nse2 = jnp.pad(nse2, ((0, 0), (0, 0), (0, pad)))
    w2 = weight.reshape(1, C, 1)

    itemsize = jnp.dtype(image.dtype).itemsize
    T = _choose_tile(hw_pad, C, itemsize)
    n_tiles = hw_pad // T

    bytes_accessed = (
        image.size * image.dtype.itemsize
        + noise.size * noise.dtype.itemsize
        + image.size * jnp.dtype(out_dtype).itemsize
        + weight.size * weight.dtype.itemsize
    )
    cost = pl.CostEstimate(
        flops=2 * N * C * H * W, transcendentals=0, bytes_accessed=bytes_accessed
    )

    out2 = pl.pallas_call(
        _noise_inject_kernel,
        out_shape=jax.ShapeDtypeStruct((N, C, hw_pad), out_dtype),
        grid_spec=pltpu.PrefetchScalarGridSpec(
            num_scalar_prefetch=0,
            grid=(N, n_tiles),
            in_specs=[
                pl.BlockSpec((1, C, T), lambda n, t: (n, 0, t)),
                pl.BlockSpec((1, 1, T), lambda n, t: (n, 0, t)),
                pl.BlockSpec((1, C, 1), lambda n, t: (0, 0, 0)),
            ],
            out_specs=pl.BlockSpec((1, C, T), lambda n, t: (n, 0, t)),
        ),
        compiler_params=pltpu.CompilerParams(
            dimension_semantics=("parallel", "parallel"),
            vmem_limit_bytes=32 * 1024 * 1024,
        ),
        cost_estimate=cost,
        # Optional in-place semantics: alias the (reshaped/padded) image buffer
        # to the output. Off by default so callers may keep using `image`.
        input_output_aliases=({0: 0} if donate_image else {}),
    )(img2, nse2, w2)

    if hw_pad != hw:
        out2 = out2[:, :, :hw]
    return out2.reshape(N, C, H, W)


if __name__ == "__main__":
    key = jax.random.PRNGKey(0)
    k_img, k_noise, k_w = jax.random.split(key, 3)

    # ---- Primary test: f32, HW a multiple of 128 -------------------------
    N, C, H, W = 2, 4, 16, 16
    image = jax.random.normal(k_img, (N, C, H, W), dtype=jnp.float32)
    noise = jax.random.normal(k_noise, (N, 1, H, W), dtype=jnp.float32)
    weight = jax.random.normal(k_w, (1, C, 1, 1), dtype=jnp.float32)
    weight_zeros = jnp.zeros((1, C, 1, 1), dtype=jnp.float32)

    out = jax.block_until_ready(noise_injection_2d(image, noise, weight))
    ref = image + weight * noise
    assert out.shape == ref.shape and out.dtype == ref.dtype
    assert jnp.allclose(out, ref, atol=1e-6, rtol=1e-6)

    # Default init (zero weight): output == image.
    out0 = jax.block_until_ready(noise_injection_2d(image, noise, weight_zeros))
    assert jnp.allclose(out0, image)

    # ---- Padding path: HW not a multiple of 128 ---------------------------
    Hp, Wp = 12, 12  # HW = 144 -> padded to 256
    image_p = jax.random.normal(k_img, (N, C, Hp, Wp), dtype=jnp.float32)
    noise_p = jax.random.normal(k_noise, (N, 1, Hp, Wp), dtype=jnp.float32)
    out_p = jax.block_until_ready(noise_injection_2d(image_p, noise_p, weight))
    ref_p = image_p + weight * noise_p
    assert jnp.allclose(out_p, ref_p, atol=1e-6, rtol=1e-6)

    # ---- bf16 activations: f32 math, single cast at the store -------------
    image_b = image.astype(jnp.bfloat16)
    noise_b = noise.astype(jnp.bfloat16)
    weight_b = weight.astype(jnp.bfloat16)
    out_b = jax.block_until_ready(noise_injection_2d(image_b, noise_b, weight_b))
    ref_b = (
        image_b.astype(jnp.float32) + weight_b.astype(jnp.float32) * noise_b.astype(jnp.float32)
    ).astype(jnp.bfloat16)
    assert out_b.dtype == jnp.bfloat16
    assert jnp.allclose(
        out_b.astype(jnp.float32), ref_b.astype(jnp.float32), atol=2e-2, rtol=2e-2
    )

    print("KERNEL_OK")
</pallas_src>

<mosaic_0001>
module attributes {stable_mosaic.version = 11 : i64} {
  func.func @_noise_inject_kernel(%arg0: i32, %arg1: i32, %arg2: memref<1x4x256xf32, #tpu.memory_space<vmem>>, %arg3: memref<1x1x256xf32, #tpu.memory_space<vmem>>, %arg4: memref<1x4x1xf32, #tpu.memory_space<vmem>>, %arg5: memref<1x4x256xf32, #tpu.memory_space<vmem>>) attributes {dimension_semantics = [#tpu.dimension_semantics<parallel>, #tpu.dimension_semantics<parallel>], iteration_bounds = array<i64: 2, 1>, scalar_prefetch = 0 : i64, scratch_operands = 0 : i64, tpu.core_type = #tpu.core_type<tc>, window_params = [{transform_indices = @transform_0, window_bounds = array<i64: 1, 4, 256>}, {transform_indices = @transform_1, window_bounds = array<i64: 1, 1, 256>}, {pipeline_mode = #tpu.pipeline_mode<synchronous>, transform_indices = @transform_2, window_bounds = array<i64: 1, 4, 1>}, {transform_indices = @transform_3, window_bounds = array<i64: 1, 4, 256>}]} {
    %c0 = arith.constant 0 : index
    %c0_0 = arith.constant 0 : index
    %c0_1 = arith.constant 0 : index
    %0 = vector.load %arg2[%c0, %c0_0, %c0_1] : memref<1x4x256xf32, #tpu.memory_space<vmem>>, vector<1x4x256xf32>
    %c0_2 = arith.constant 0 : index
    %c0_3 = arith.constant 0 : index
    %c0_4 = arith.constant 0 : index
    %1 = vector.load %arg3[%c0_2, %c0_3, %c0_4] : memref<1x1x256xf32, #tpu.memory_space<vmem>>, vector<1x1x256xf32>
    %c0_5 = arith.constant 0 : index
    %c0_6 = arith.constant 0 : index
    %c0_7 = arith.constant 0 : index
    %2 = vector.load %arg4[%c0_5, %c0_6, %c0_7] : memref<1x4x1xf32, #tpu.memory_space<vmem>>, vector<1x4x1xf32>
    %3 = vector.broadcast %2 : vector<1x4x1xf32> to vector<1x4x256xf32>
    %4 = vector.broadcast %1 : vector<1x1x256xf32> to vector<1x4x256xf32>
    %5 = arith.mulf %3, %4 : vector<1x4x256xf32>
    %6 = arith.addf %0, %5 : vector<1x4x256xf32>
    %c0_8 = arith.constant 0 : index
    %c0_9 = arith.constant 0 : index
    %c0_10 = arith.constant 0 : index
    %7 = vector.load %arg5[%c0_8, %c0_9, %c0_10] : memref<1x4x256xf32, #tpu.memory_space<vmem>>, vector<1x4x256xf32>
    tpu.vector_store %arg5[%c0_8, %c0_9, %c0_10], %6 {strides = array<i32>} : memref<1x4x256xf32, #tpu.memory_space<vmem>>, vector<1x4x256xf32>,
    return
  }
  func.func @transform_0(%arg0: i32, %arg1: i32) -> (i32, i32, i32) {
    %c0_i32 = arith.constant 0 : i32
    %c0_i32_0 = arith.constant 0 : i32
    return %arg0, %c0_i32, %arg1 : i32, i32, i32
  }
  func.func @transform_1(%arg0: i32, %arg1: i32) -> (i32, i32, i32) {
    %c0_i32 = arith.constant 0 : i32
    %c0_i32_0 = arith.constant 0 : i32
    return %arg0, %c0_i32, %arg1 : i32, i32, i32
  }
  func.func @transform_2(%arg0: i32, %arg1: i32) -> (i32, i32, i32) {
    %c0_i32 = arith.constant 0 : i32
    %c0_i32_0 = arith.constant 0 : i32
    %c0_i32_1 = arith.constant 0 : i32
    %c0_i32_2 = arith.constant 0 : i32
    return %c0_i32, %c0_i32_0, %c0_i32_1 : i32, i32, i32
  }
  func.func @transform_3(%arg0: i32, %arg1: i32) -> (i32, i32, i32) {
    %c0_i32 = arith.constant 0 : i32
    %c0_i32_0 = arith.constant 0 : i32
    return %arg0, %c0_i32, %arg1 : i32, i32, i32
  }
}

</mosaic_0001>

<llo_original>
// kernel: noise_injection_2d.1
$region0: #{noise_injection_2d.1}
  #allocation0 [shape = 'u32[]', space=smem, size = 0x4, offset = 0x4, fixed_abs, tag = 'smem constant byte address 0x4 - core index']
  #allocation1 [shape = 'u32[144,128]{1,0:T(1,128)}', space=vmem, size = 0x12000, scoped, tag = 'internal scratch']
  %s0 = inlined_call_operand.vmem [shape: f32[2,4,256], index: 0, kind: input, shape index: {}]
  %s1 = inlined_call_operand.vmem [shape: f32[2,1,256], index: 1, kind: input, shape index: {}]
  %s2 = inlined_call_operand.vmem [shape: f32[1,4,1], index: 2, kind: input, shape index: {}]
  %s3 = inlined_call_operand.vmem [shape: f32[2,4,256], index: 3, kind: output, shape index: {}]
  %s4 = sld [smem:[#allocation0]]
  $region45: #{noise_injection_2d.1} parent=0
    _
  %s6 = ssub.s32 1, %s4
  %s7 = scalar_select 0, %s6, %s4
  loop: start=0, step=1, limit=4
  $region2: #{noise_injection_2d.1} parent=0 // loop_pre_header
    _
  $region3: #{noise_injection_2d.1} parent=0 // loop_header
    %s9 = sphi 0, %s13
    %p10 = scmp.ge.s32.totalorder %s9, 4
    %s16 = sphi 0, %s28
    %s17 = sphi 0, %s24
    %s18 = sphi 0, %s16
    %s19 = sphi 0, %s17
    %s20 = sphi 0, %s18
    %s21 = sphi 0, %s19
    %s33 = sphi 0, %s35
    %s36 = sphi 0, %s33
    %s37 = sphi 0, %s36
    %s53 = sphi 0, %s37
    %s61 = sphi 0, %s63
    %s64 = sphi 0, %s61
    %s65 = sphi 0, %s64
    %s81 = sphi 0, %s65
    %s85 = sphi 0, %s85
    %s87 = sphi 0, %s85
    %s88 = sphi 0, %s87
    %s102 = sphi 0, %s88
    %s110 = sphi 0, %s112
    %s113 = sphi 0, %s110
    %s114 = sphi 0, %s113
    %s130 = sphi 0, %s114
  $region4: #{noise_injection_2d.1} parent=0 // loop_header_branch
    %12 = sbr.rel (%p10) target = $region8
  $region5: #{noise_injection_2d.1} parent=0 // loop_body
    %s14 = ssub.s32 %s9, 1
    %s15 = ssub.s32 %s9, 2
    %s22 = sadd.s32 1, %s17
    %p23 = scmp.ge.s32.totalorder %s22, 1
    %s24 = scalar_select %p23, 0, %s22
    %s25 = sadd.s32 1, %s16
    %s26 = scalar_select %p23, %s25, %s16
    %p27 = scmp.ge.s32.totalorder %s26, 2
    %s28 = scalar_select %p27, 0, %s26
    %s29 = ssub.s32 %s16, %s28
    %s30 = ssub.s32 %s17, %s24
    %s31 = sor.u32 %s29, %s30
    %p32 = scmp.eq.s32.totalorder %s31, 0
    %s34 = sadd.s32 %s33, 1
    %s35 = scalar_select %p32, %s33, %s34
    %p38 = pneg %p32
    %p39 = scmp.eq.s32.totalorder %s9, 1
    %p40 = por %p38, %p39
    %p41 = scmp.ne.s32.totalorder %s33, %s36
    %p42 = scmp.eq.s32.totalorder %s9, 0
    %p43 = por %p41, %p42
    %p44 = scmp.ne.s32.totalorder %s33, %s36
    %p45 = scmp.eq.s32.totalorder %s14, 1
    %p46 = por %p44, %p45
    %p47 = scmp.ne.s32.totalorder %s36, %s37
    %p48 = scmp.eq.s32.totalorder %s14, 0
    %p49 = por %p47, %p48
    %p50 = scmp.ne.s32.totalorder %s36, %s37
    %p51 = scmp.eq.s32.totalorder %s15, 1
    %p52 = por %p50, %p51
    %p54 = scmp.ne.s32.totalorder %s37, %s53
    %p55 = scmp.eq.s32.totalorder %s15, 0
    %p56 = por %p54, %p55
    %s57 = ssub.s32 %s16, %s28
    %s58 = ssub.s32 %s17, %s24
    %s59 = sor.u32 %s57, %s58
    %p60 = scmp.eq.s32.totalorder %s59, 0
    %s62 = sadd.s32 %s61, 1
    %s63 = scalar_select %p60, %s61, %s62
    %p66 = pneg %p60
    %p67 = scmp.eq.s32.totalorder %s9, 1
    %p68 = por %p66, %p67
    %p69 = scmp.ne.s32.totalorder %s61, %s64
    %p70 = scmp.eq.s32.totalorder %s9, 0
    %p71 = por %p69, %p70
    %p72 = scmp.ne.s32.totalorder %s61, %s64
    %p73 = scmp.eq.s32.totalorder %s14, 1
    %p74 = por %p72, %p73
    %p75 = scmp.ne.s32.totalorder %s64, %s65
    %p76 = scmp.eq.s32.totalorder %s14, 0
    %p77 = por %p75, %p76
    %p78 = scmp.ne.s32.totalorder %s64, %s65
    %p79 = scmp.eq.s32.totalorder %s15, 1
    %p80 = por %p78, %p79
    %p82 = scmp.ne.s32.totalorder %s65, %s81
    %p83 = scmp.eq.s32.totalorder %s15, 0
    %p84 = por %p82, %p83
    %s86 = sadd.s32 %s85, 1
    %p89 = scmp.eq.s32.totalorder %s9, 1
    %p90 = scmp.ne.s32.totalorder %s85, %s87
    %p91 = scmp.eq.s32.totalorder %s9, 0
    %p92 = por %p90, %p91
    %p93 = scmp.ne.s32.totalorder %s85, %s87
    %p94 = scmp.eq.s32.totalorder %s14, 1
    %p95 = por %p93, %p94
    %p96 = scmp.ne.s32.totalorder %s87, %s88
    %p97 = scmp.eq.s32.totalorder %s14, 0
    %p98 = por %p96, %p97
    %p99 = scmp.ne.s32.totalorder %s87, %s88
    %p100 = scmp.eq.s32.totalorder %s15, 1
    %p101 = por %p99, %p100
    %p103 = scmp.ne.s32.totalorder %s88, %s102
    %p104 = scmp.eq.s32.totalorder %s15, 0
    %p105 = por %p103, %p104
    %s106 = ssub.s32 %s16, %s28
    %s107 = ssub.s32 %s17, %s24
    %s108 = sor.u32 %s106, %s107
    %p109 = scmp.eq.s32.totalorder %s108, 0
    %s111 = sadd.s32 %s110, 1
    %s112 = scalar_select %p109, %s110, %s111
    %p115 = pneg %p109
    %p116 = scmp.eq.s32.totalorder %s9, 1
    %p117 = por %p115, %p116
    %p118 = scmp.ne.s32.totalorder %s110, %s113
    %p119 = scmp.eq.s32.totalorder %s9, 0
    %p120 = por %p118, %p119
    %p121 = scmp.ne.s32.totalorder %s110, %s113
    %p122 = scmp.eq.s32.totalorder %s14, 1
    %p123 = por %p121, %p122
    %p124 = scmp.ne.s32.totalorder %s113, %s114
    %p125 = scmp.eq.s32.totalorder %s14, 0
    %p126 = por %p124, %p125
    %p127 = scmp.ne.s32.totalorder %s113, %s114
    %p128 = scmp.eq.s32.totalorder %s15, 1
    %p129 = por %p127, %p128
    %p131 = scmp.ne.s32.totalorder %s114, %s130
    %p132 = scmp.eq.s32.totalorder %s15, 0
    %p133 = por %p131, %p132
    %p134 = scmp.le.s32.totalorder 1, %s9
    %p135 = scmp.lt.s32.totalorder %s9, 3
    %p136 = pnand %p134, %p135
    %p137 = pneg %p136
    // Predicated region
    $region9: #{noise_injection_2d.1} parent=5 // pred_check
      _
    $region10: #{noise_injection_2d.1} parent=5 // pred_check_branch
      %139 = sbr.rel (%p136) target = $region12
    $region11: #{noise_injection_2d.1} parent=5 // pred_region
      %s140 = ssub.s32 %s9, 1
      // Predicated region
      $region13: #{noise_injection_2d.1} parent=11 // pred_check
        %p141 = pneg %p98
      $region14: #{noise_injection_2d.1} parent=11 // pred_check_branch
        %143 = sbr.rel (%p141) target = $region16
      $region15: #{noise_injection_2d.1} parent=11 // pred_region
        _
      $region16: #{noise_injection_2d.1} parent=11 // pred_fallthru
        _
    $region12: #{noise_injection_2d.1} parent=5 // pred_fallthru
      _
    %p144 = scmp.lt.s32.totalorder %s9, 2
    // Predicated region
    $region17: #{noise_injection_2d.1} parent=5 // pred_check
      %p145 = pneg %p144
    $region18: #{noise_injection_2d.1} parent=5 // pred_check_branch
      %147 = sbr.rel (%p145) target = $region20
    $region19: #{noise_injection_2d.1} parent=5 // pred_region
      // Predicated region
      $region21: #{noise_injection_2d.1} parent=19 // pred_check
        %p148 = pneg %p43
      $region22: #{noise_injection_2d.1} parent=19 // pred_check_branch
        %150 = sbr.rel (%p148) target = $region24
      $region23: #{noise_injection_2d.1} parent=19 // pred_region
        %s151 = smul.u32 2, %s17
        %p152 = scmp.lt.s32.totalorder %s16, 1
        %s153 = scalar_select %p152, %s16, 1
        %p154 = scmp.lt.s32.totalorder %s151, 1
        %s155 = scalar_select %p154, %s151, 1
        %s156 = smul.addr %s153, 2
        %s157 = sadd.s32 %s155, %s156
        %s158 = smul.addr %s157, 4
        %s159 = scalar_lea.vmem %s0, %s158
        %s160 = smul.u32 2, %s17
      $region24: #{noise_injection_2d.1} parent=19 // pred_fallthru
        _
      // Predicated region
      $region25: #{noise_injection_2d.1} parent=19 // pred_check
        %p161 = pneg %p71
      $region26: #{noise_injection_2d.1} parent=19 // pred_check_branch
        %163 = sbr.rel (%p161) target = $region28
      $region27: #{noise_injection_2d.1} parent=19 // pred_region
        %s164 = smul.u32 2, %s17
        %p165 = scmp.lt.s32.totalorder %s16, 1
        %s166 = scalar_select %p165, %s16, 1
        %p167 = scmp.lt.s32.totalorder %s164, 1
        %s168 = scalar_select %p167, %s164, 1
        %s169 = smul.addr %s166, 2
        %s170 = sadd.s32 %s168, %s169
        %s171 = scalar_lea.vmem %s1, %s170
        %s172 = smul.u32 2, %s17
      $region28: #{noise_injection_2d.1} parent=19 // pred_fallthru
        _
    $region20: #{noise_injection_2d.1} parent=5 // pred_fallthru
      _
    %p173 = scmp.le.s32.totalorder 1, %s9
    %p174 = scmp.lt.s32.totalorder %s9, 3
    %p175 = pnand %p173, %p174
    %p176 = pneg %p175
    // Predicated region
    $region29: #{noise_injection_2d.1} parent=5 // pred_check
      _
    $region30: #{noise_injection_2d.1} parent=5 // pred_check_branch
      %178 = sbr.rel (%p175) target = $region32
    $region31: #{noise_injection_2d.1} parent=5 // pred_region
      %s179 = ssub.s32 %s9, 1
      %s180 = smul.u32 2, %s19
      %p181 = scmp.lt.s32.totalorder %s18, 1
      %s182 = scalar_select %p181, %s18, 1
      %p183 = scmp.lt.s32.totalorder %s180, 1
      %s184 = scalar_select %p183, %s180, 1
      %s185 = smul.addr %s182, 2
      %s186 = sadd.s32 %s184, %s185
      %s187 = smul.addr %s186, 4
      %s188 = scalar_lea.vmem %s0, %s187
      %p189 = pneg %p49
      %p190 = pneg %p46
      %s191 = smul.u32 2, %s19
      %p192 = scmp.lt.s32.totalorder %s18, 1
      %s193 = scalar_select %p192, %s18, 1
      %p194 = scmp.lt.s32.totalorder %s191, 1
      %s195 = scalar_select %p194, %s191, 1
      %s196 = smul.addr %s193, 2
      %s197 = sadd.s32 %s195, %s196
      %s198 = scalar_lea.vmem %s1, %s197
      %p199 = pneg %p77
      %p200 = pneg %p74
      %p201 = pneg %p98
      %p202 = pneg %p95
      %p203 = pneg %p126
      %p204 = pneg %p123
      %s205 = smul.u32 2, %s19
      %p206 = scmp.lt.s32.totalorder %s18, 1
      %s207 = scalar_select %p206, %s18, 1
      %p208 = scmp.lt.s32.totalorder %s205, 1
      %s209 = scalar_select %p208, %s205, 1
      %s210 = smul.addr %s207, 2
      %s211 = sadd.s32 %s209, %s210
      %s212 = smul.addr %s211, 4
      %s213 = scalar_lea.vmem %s3, %s212
      %s214 = smul.u32 2, %s19
      %p215 = scmp.lt.s32.totalorder %s18, 1
      %s216 = scalar_select %p215, %s18, 1
      %p217 = scmp.lt.s32.totalorder %s214, 1
      %s218 = scalar_select %p217, %s214, 1
      %s219 = smul.addr %s216, 2
      %s220 = sadd.s32 %s218, %s219
      %s221 = smul.addr %s220, 4
      %s222 = scalar_lea.vmem %s0, %s221
      %s223 = smul.u32 2, %s19
      %s224 = smul.u32 2, %s19
      %p225 = scmp.lt.s32.totalorder %s18, 1
      %s226 = scalar_select %p225, %s18, 1
      %p227 = scmp.lt.s32.totalorder %s224, 1
      %s228 = scalar_select %p227, %s224, 1
      %s229 = smul.addr %s226, 2
      %s230 = sadd.s32 %s228, %s229
      %s231 = scalar_lea.vmem %s1, %s230
      %s232 = smul.u32 2, %s19
      %s233 = smul.u32 2, %s19
      %p234 = scmp.lt.s32.totalorder %s18, 1
      %s235 = scalar_select %p234, %s18, 1
      %p236 = scmp.lt.s32.totalorder %s233, 1
      %s237 = scalar_select %p236, %s233, 1
      %s238 = smul.addr %s235, 2
      %s239 = sadd.s32 %s237, %s238
      %s240 = smul.addr %s239, 4
      %s241 = scalar_lea.vmem %s3, %s240
      %s242 = smul.u32 2, %s19
      %v243 = vld [vmem:[%s222] sm:$0xff]
      %v244 = vld [vmem:[%s231] sm:$0x3]
      %v245 = vld [vmem:[%s2] sm:$0xf]
      %247 = vset.pattern.permute.xlu0 0
      %248 = vperm.xlu0 %247, %v245
      %v249 = vpop.permute.xlu0 %248
      %v252 = vlaneseq
      %v253 = vshrl.u32 %v252, 7
      %v254 = vsub.s32 0, %v253
      %v255 = vrot.slane %v244, %v254
      %v256 = vlaneseq
      %v257 = vshrl.u32 %v256, 7
      %v258 = vsub.s32 1, %v257
      %v259 = vrot.slane %v244, %v258
      %v262 = vmul.f32 %v249, %v255
      %v263 = vmul.f32 %v249, %v259
      %v266 = vcombine.low %v262, %v263
      %v268 = vadd.f32 %v243, %v266
      %269 = vst [vmem:[%s241] sm:$0xff] %v268
      %s270 = smul.u32 2, %s19
      %p271 = scmp.lt.s32.totalorder %s18, 1
      %s272 = scalar_select %p271, %s18, 1
      %p273 = scmp.lt.s32.totalorder %s270, 1
      %s274 = scalar_select %p273, %s270, 1
      %s275 = smul.addr %s272, 2
      %s276 = sadd.s32 %s274, %s275
      %s277 = smul.addr %s276, 4
      %s278 = scalar_lea.vmem %s3, %s277
      // Predicated region
      $region33: #{noise_injection_2d.1} parent=31 // pred_check
        %p279 = pneg %p123
      $region34: #{noise_injection_2d.1} parent=31 // pred_check_branch
        %281 = sbr.rel (%p279) target = $region36
      $region35: #{noise_injection_2d.1} parent=31 // pred_region
        %s282 = smul.u32 2, %s19
      $region36: #{noise_injection_2d.1} parent=31 // pred_fallthru
        _
    $region32: #{noise_injection_2d.1} parent=5 // pred_fallthru
      _
    %p283 = scmp.le.s32.totalorder 2, %s9
    // Predicated region
    $region37: #{noise_injection_2d.1} parent=5 // pred_check
      %p284 = pneg %p283
    $region38: #{noise_injection_2d.1} parent=5 // pred_check_branch
      %286 = sbr.rel (%p284) target = $region40
    $region39: #{noise_injection_2d.1} parent=5 // pred_region
      %s287 = ssub.s32 %s9, 2
      // Predicated region
      $region41: #{noise_injection_2d.1} parent=39 // pred_check
        %p288 = pneg %p129
      $region42: #{noise_injection_2d.1} parent=39 // pred_check_branch
        %290 = sbr.rel (%p288) target = $region44
      $region43: #{noise_injection_2d.1} parent=39 // pred_region
        %s291 = smul.u32 2, %s21
        %p292 = scmp.lt.s32.totalorder %s20, 1
        %s293 = scalar_select %p292, %s20, 1
        %p294 = scmp.lt.s32.totalorder %s291, 1
        %s295 = scalar_select %p294, %s291, 1
        %s296 = smul.addr %s293, 2
        %s297 = sadd.s32 %s295, %s296
        %s298 = smul.addr %s297, 4
        %s299 = scalar_lea.vmem %s3, %s298
      $region44: #{noise_injection_2d.1} parent=39 // pred_fallthru
        _
    $region40: #{noise_injection_2d.1} parent=5 // pred_fallthru
      _
  $region6: #{noise_injection_2d.1} parent=0 // loop_footer
    %s13 = sadd.s32 1, %s9
  $region7: #{noise_injection_2d.1} parent=0 // loop_footer_branch
    %8 = sbr.rel target = $region3
  $region8: #{noise_injection_2d.1} parent=0 // loop_exit
    _

</llo_original>
